<compile_context>
chip_gen: v7x
topology: tpu7x:2x2x1
jax: 0.10.0
libtpu: 0.0.40
codegen_flags: <defaults>
</compile_context>

<pallas_src>
import functools

import jax
import jax.numpy as jnp
import numpy as np
from jax import lax
from jax.experimental import pallas as pl
from jax.experimental.pallas import tpu as pltpu


def _topk_routing_kernel(q_ref, k_ref, w_ref, idx_ref, *,
                         scale, topk, batch_tile, row_tile):
    """q_ref/k_ref: (Bt, P, C) VMEM tiles. w_ref/idx_ref: (Bt, P, topk)."""
    P = q_ref.shape[1]

    # Hoisted constants (one per distinct row-tile height; at most two).
    row_starts = list(range(0, P, row_tile))
    rows_set = sorted({min(row_tile, P - r0) for r0 in row_starts})
    col_iota = {r: lax.broadcasted_iota(jnp.int32, (r, P), 1) for r in rows_set}
    slot_iota = {r: lax.broadcasted_iota(jnp.int32, (r, topk), 1) for r in rows_set}

    def process_batch(b):
        # Short static row-tile loop (unrolled); live set per iteration is one
        # (rows, P) logits slab plus the (rows, topk) selections.
        for r0 in row_starts:
            rows = min(row_tile, P - r0)
            col = col_iota[rows]
            slot = slot_iota[rows]

            # Load q rows / k only at the dot site; contraction on C for both
            # operands (no k transpose relayout), f32 accumulation on the MXU.
            q_r = q_ref[b, pl.ds(r0, rows), :]                       # (rows, C)
            logits = lax.dot_general(
                q_r, k_ref[b],
                dimension_numbers=(((1,), (1,)), ((), ())),
                preferred_element_type=jnp.float32)                  # (rows, P)

            # Iterative top-k: max -> first-occurrence index -> mask -> repeat.
            # Matches torch.topk (descending values, ties toward lowest index).
            # Exact f32/tie parity is kept, so the two cross-lane reductions per
            # step are not fused into a packed 32-bit sort key.
            cur = logits
            vals = jnp.zeros((rows, topk), jnp.float32)
            idxs = jnp.zeros((rows, topk), jnp.int32)
            for t in range(topk):
                m = jnp.max(cur, axis=-1, keepdims=True)                     # (rows, 1)
                idx = jnp.min(jnp.where(cur == m, col, jnp.int32(P)),
                              axis=-1, keepdims=True)                        # (rows, 1)
                vals = jnp.where(slot == t, m, vals)
                idxs = jnp.where(slot == t, idx, idxs)
                if t + 1 < topk:
                    cur = jnp.where(col == idx, -jnp.inf, cur)

            # Softmax temperature on the narrow (rows, topk) selection only
            # (scale > 0 => same ordering as (q*scale)@k^T). vals are sorted
            # descending, so column 0 is the row max: no extra reduce needed.
            v = vals * scale
            e = jnp.exp(v - v[:, 0:1])
            w = e / jnp.sum(e, axis=-1, keepdims=True)

            w_ref[b, pl.ds(r0, rows), :] = w.astype(w_ref.dtype)
            idx_ref[b, pl.ds(r0, rows), :] = idxs

    if batch_tile == 1:
        process_batch(0)
    else:
        def body(b, carry):
            process_batch(b)
            return carry
        lax.fori_loop(0, batch_tile, body, jnp.int32(0))


def _tensorcores_per_chip():
    """Best-effort TC count: among v5e/v6e/v7x only v7x has 2 TensorCores/chip."""
    try:
        kind = jax.devices()[0].device_kind.lower()
    except Exception:
        return 1
    return 2 if "7" in kind else 1


def _pick_batch_tile(n, per_batch_bytes, budget_bytes, tensorcores):
    """Largest divisor of n whose double-buffered footprint fits the VMEM budget.

    On 2-TC parts prefer an even number (>= 2) of grid steps for load balance; on
    1-TC parts take the biggest tile (fewest grid steps, less per-step overhead).
    """
    divisors = [d for d in range(1, n + 1) if n % d == 0]
    fits = [d for d in divisors if 2 * d * per_batch_bytes <= budget_bytes] or [1]
    if tensorcores >= 2 and n >= 2:
        even = [d for d in fits if (n // d) % 2 == 0]
        two_plus = [d for d in fits if n // d >= 2]
        fits = even or two_plus or fits
    return max(fits)


def topk_routing(query, key, *, topk=4, qk_scale=None, batch_tile=None,
                 vmem_budget_bytes=24 * 1024 * 1024):
    """query, key: (n, p^2, c) -> (r_weight, topk_index), both (n, p^2, topk)."""
    n, P, C = query.shape
    assert key.shape == (n, P, C)
    assert 0 < topk <= P, f"topk ({topk}) must be <= number of tokens p^2 ({P})"
    # Mirror torch: `qk_scale or qk_dim ** -0.5` (None/0 fall back to the default).
    scale = float(qk_scale) if qk_scale else float(C) ** (-0.5)
    assert scale > 0.0, "post-selection temperature requires scale > 0"

    w_dtype = query.dtype
    per_batch_bytes = (2 * P * C * query.dtype.itemsize          # q + k tiles
                       + P * topk * (jnp.dtype(w_dtype).itemsize + 4))  # w + idx

    if batch_tile is None:
        bt = _pick_batch_tile(n, per_batch_bytes, vmem_budget_bytes,
                              _tensorcores_per_chip())
    else:
        bt = batch_tile
    assert n % bt == 0, f"batch tile {bt} must divide n={n}"

    grid = (n // bt,)
    row_tile = min(P, 128)

    # Double-buffered inputs + outputs; <= 32 MiB at the default budget (safe on
    # v7x's 64 MiB per-TC VMEM), grows only if the caller raises the budget.
    footprint = 2 * bt * per_batch_bytes
    vmem_limit = int(max(32 * 1024 * 1024, footprint + 8 * 1024 * 1024))

    kernel = functools.partial(_topk_routing_kernel, scale=scale, topk=topk,
                               batch_tile=bt, row_tile=row_tile)

    grid_spec = pltpu.PrefetchScalarGridSpec(
        num_scalar_prefetch=0,
        grid=grid,
        in_specs=[
            pl.BlockSpec((bt, P, C), lambda g: (g, 0, 0)),
            pl.BlockSpec((bt, P, C), lambda g: (g, 0, 0)),
        ],
        out_specs=[
            pl.BlockSpec((bt, P, topk), lambda g: (g, 0, 0)),
            pl.BlockSpec((bt, P, topk), lambda g: (g, 0, 0)),
        ],
    )

    r_weight, topk_index = pl.pallas_call(
        kernel,
        out_shape=(
            jax.ShapeDtypeStruct((n, P, topk), w_dtype),
            jax.ShapeDtypeStruct((n, P, topk), jnp.int32),
        ),
        grid_spec=grid_spec,
        compiler_params=pltpu.CompilerParams(
            dimension_semantics=("parallel",),
            vmem_limit_bytes=vmem_limit,
        ),
    )(query, key)
    return r_weight, topk_index


def _reference(query, key, *, topk, qk_scale=None):
    """Plain-JAX reference mirroring the PyTorch forward.

    The scale is applied to the selected logits (mathematically equivalent to
    (q*scale) @ k^T for scale > 0), matching the kernel's rounding order so the
    index-equality check stays deterministic.
    """
    n, P, C = query.shape
    scale = float(qk_scale) if qk_scale else float(C) ** (-0.5)
    logits = jnp.einsum("npc,nqc->npq", query, key,
                        preferred_element_type=jnp.float32,
                        precision=jax.lax.Precision.HIGHEST)
    vals, idx = jax.lax.top_k(logits, topk)
    w = jax.nn.softmax(vals * scale, axis=-1).astype(query.dtype)
    return w, idx


if __name__ == "__main__":
    # Small shapes consistent with (n, p^2, c): batch=8, p=8 -> p^2=64 tokens, qk_dim=32.
    n, P, C = 8, 64, 32
    topk = 4

    key0 = jax.random.PRNGKey(0)
    kq, kk = jax.random.split(key0)
    query = jax.random.normal(kq, (n, P, C), dtype=jnp.float32)
    key_t = jax.random.normal(kk, (n, P, C), dtype=jnp.float32)

    r_weight, topk_index = topk_routing(query, key_t, topk=topk)
    r_weight = jax.block_until_ready(r_weight)
    topk_index = jax.block_until_ready(topk_index)

    # Sanity check against the plain-JAX reference.
    w_ref, idx_ref = _reference(query, key_t, topk=topk)
    np.testing.assert_allclose(np.asarray(r_weight), np.asarray(w_ref),
                               rtol=1e-5, atol=1e-5)
    np.testing.assert_array_equal(np.asarray(topk_index), np.asarray(idx_ref))

    print("KERNEL_OK")
</pallas_src>

<mosaic_0001>
module attributes {stable_mosaic.version = 11 : i64} {
  func.func @_topk_routing_kernel(%arg0: i32, %arg1: memref<8x64x32xf32, #tpu.memory_space<vmem>>, %arg2: memref<8x64x32xf32, #tpu.memory_space<vmem>>, %arg3: memref<8x64x4xf32, #tpu.memory_space<vmem>>, %arg4: memref<8x64x4xi32, #tpu.memory_space<vmem>>) attributes {dimension_semantics = [#tpu.dimension_semantics<parallel>], iteration_bounds = array<i64: 1>, scalar_prefetch = 0 : i64, scratch_operands = 0 : i64, tpu.core_type = #tpu.core_type<tc>, window_params = [{transform_indices = @transform_0, window_bounds = array<i64: 8, 64, 32>}, {transform_indices = @transform_1, window_bounds = array<i64: 8, 64, 32>}, {transform_indices = @transform_2, window_bounds = array<i64: 8, 64, 4>}, {transform_indices = @transform_3, window_bounds = array<i64: 8, 64, 4>}]} {
    %0 = tpu.iota {dimensions = array<i32: 1>} : vector<64x64xi32>
    %1 = tpu.iota {dimensions = array<i32: 1>} : vector<64x4xi32>
    %c0_i32 = arith.constant 0 : i32
    %c8_i32 = arith.constant 8 : i32
    %2 = arith.addi %c0_i32, %c8_i32 : i32
    %c1_i32 = arith.constant 1 : i32
    scf.for %arg5 = %c0_i32 to %2 step %c1_i32  : i32 {
      %3 = arith.index_cast %arg5 : i32 to index
      %c0 = arith.constant 0 : index
      %c0_1 = arith.constant 0 : index
      %4 = vector.load %arg1[%3, %c0, %c0_1] : memref<8x64x32xf32, #tpu.memory_space<vmem>>, vector<1x64x32xf32>
      %5 = vector.shape_cast %4 : vector<1x64x32xf32> to vector<64x32xf32>
      %6 = arith.index_cast %arg5 : i32 to index
      %c0_2 = arith.constant 0 : index
      %c0_3 = arith.constant 0 : index
      %7 = vector.load %arg2[%6, %c0_2, %c0_3] : memref<8x64x32xf32, #tpu.memory_space<vmem>>, vector<1x64x32xf32>
      %8 = vector.shape_cast %7 : vector<1x64x32xf32> to vector<64x32xf32>
      %cst = arith.constant dense<0.000000e+00> : vector<64x64xf32>
      %9 = tpu.matmul %5, %8, %cst {dimension_numbers = #tpu.dot_dimension_numbers<[1], [1], [0], [0], [0, 0, 1, 0], [], []>} : vector<64x32xf32>, vector<64x32xf32>, vector<64x64xf32> -> vector<64x64xf32>
      %cst_4 = arith.constant 0.000000e+00 : f32
      %10 = vector.broadcast %cst_4 : f32 to vector<64x4xf32>
      %c0_i32_5 = arith.constant 0 : i32
      %11 = vector.broadcast %c0_i32_5 : i32 to vector<64x4xi32>
      %cst_6 = arith.constant dense<0xFF800000> : vector<64xf32>
      %12 = vector.multi_reduction <maximumf>, %9, %cst_6 [1] : vector<64x64xf32> to vector<64xf32>
      %13 = vector.shape_cast %12 : vector<64xf32> to vector<64x1xf32>
      %14 = vector.broadcast %13 : vector<64x1xf32> to vector<64x64xf32>
      %15 = arith.cmpf oeq, %9, %14 : vector<64x64xf32>
      %c64_i32 = arith.constant 64 : i32
      %16 = vector.broadcast %c64_i32 : i32 to vector<64x64xi32>
      %17 = arith.select %15, %0, %16 : vector<64x64xi1>, vector<64x64xi32>
      %cst_7 = arith.constant dense<2147483647> : vector<64xi32>
      %18 = vector.multi_reduction <minsi>, %17, %cst_7 [1] : vector<64x64xi32> to vector<64xi32>
      %19 = vector.shape_cast %18 : vector<64xi32> to vector<64x1xi32>
      %c0_i32_8 = arith.constant 0 : i32
      %20 = vector.broadcast %c0_i32_8 : i32 to vector<64x4xi32>
      %21 = arith.cmpi eq, %1, %20 : vector<64x4xi32>
      %22 = vector.shape_cast %13 : vector<64x1xf32> to vector<64x1xf32>
      %23 = vector.broadcast %22 : vector<64x1xf32> to vector<64x4xf32>
      %24 = arith.select %21, %23, %10 : vector<64x4xi1>, vector<64x4xf32>
      %c0_i32_9 = arith.constant 0 : i32
      %25 = vector.broadcast %c0_i32_9 : i32 to vector<64x4xi32>
      %26 = arith.cmpi eq, %1, %25 : vector<64x4xi32>
      %27 = vector.shape_cast %19 : vector<64x1xi32> to vector<64x1xi32>
      %28 = vector.broadcast %27 : vector<64x1xi32> to vector<64x4xi32>
      %29 = arith.select %26, %28, %11 : vector<64x4xi1>, vector<64x4xi32>
      %30 = vector.broadcast %19 : vector<64x1xi32> to vector<64x64xi32>
      %31 = arith.cmpi eq, %0, %30 : vector<64x64xi32>
      %cst_10 = arith.constant 0xFF800000 : f32
      %32 = vector.broadcast %cst_10 : f32 to vector<64x64xf32>
      %33 = arith.select %31, %32, %9 : vector<64x64xi1>, vector<64x64xf32>
      %cst_11 = arith.constant dense<0xFF800000> : vector<64xf32>
      %34 = vector.multi_reduction <maximumf>, %33, %cst_11 [1] : vector<64x64xf32> to vector<64xf32>
      %35 = vector.shape_cast %34 : vector<64xf32> to vector<64x1xf32>
      %36 = vector.broadcast %35 : vector<64x1xf32> to vector<64x64xf32>
      %37 = arith.cmpf oeq, %33, %36 : vector<64x64xf32>
      %c64_i32_12 = arith.constant 64 : i32
      %38 = vector.broadcast %c64_i32_12 : i32 to vector<64x64xi32>
      %39 = arith.select %37, %0, %38 : vector<64x64xi1>, vector<64x64xi32>
      %cst_13 = arith.constant dense<2147483647> : vector<64xi32>
      %40 = vector.multi_reduction <minsi>, %39, %cst_13 [1] : vector<64x64xi32> to vector<64xi32>
      %41 = vector.shape_cast %40 : vector<64xi32> to vector<64x1xi32>
      %c1_i32_14 = arith.constant 1 : i32
      %42 = vector.broadcast %c1_i32_14 : i32 to vector<64x4xi32>
      %43 = arith.cmpi eq, %1, %42 : vector<64x4xi32>
      %44 = vector.shape_cast %35 : vector<64x1xf32> to vector<64x1xf32>
      %45 = vector.broadcast %44 : vector<64x1xf32> to vector<64x4xf32>
      %46 = arith.select %43, %45, %24 : vector<64x4xi1>, vector<64x4xf32>
      %c1_i32_15 = arith.constant 1 : i32
      %47 = vector.broadcast %c1_i32_15 : i32 to vector<64x4xi32>
      %48 = arith.cmpi eq, %1, %47 : vector<64x4xi32>
      %49 = vector.shape_cast %41 : vector<64x1xi32> to vector<64x1xi32>
      %50 = vector.broadcast %49 : vector<64x1xi32> to vector<64x4xi32>
      %51 = arith.select %48, %50, %29 : vector<64x4xi1>, vector<64x4xi32>
      %52 = vector.broadcast %41 : vector<64x1xi32> to vector<64x64xi32>
      %53 = arith.cmpi eq, %0, %52 : vector<64x64xi32>
      %cst_16 = arith.constant 0xFF800000 : f32
      %54 = vector.broadcast %cst_16 : f32 to vector<64x64xf32>
      %55 = arith.select %53, %54, %33 : vector<64x64xi1>, vector<64x64xf32>
      %cst_17 = arith.constant dense<0xFF800000> : vector<64xf32>
      %56 = vector.multi_reduction <maximumf>, %55, %cst_17 [1] : vector<64x64xf32> to vector<64xf32>
      %57 = vector.shape_cast %56 : vector<64xf32> to vector<64x1xf32>
      %58 = vector.broadcast %57 : vector<64x1xf32> to vector<64x64xf32>
      %59 = arith.cmpf oeq, %55, %58 : vector<64x64xf32>
      %c64_i32_18 = arith.constant 64 : i32
      %60 = vector.broadcast %c64_i32_18 : i32 to vector<64x64xi32>
      %61 = arith.select %59, %0, %60 : vector<64x64xi1>, vector<64x64xi32>
      %cst_19 = arith.constant dense<2147483647> : vector<64xi32>
      %62 = vector.multi_reduction <minsi>, %61, %cst_19 [1] : vector<64x64xi32> to vector<64xi32>
      %63 = vector.shape_cast %62 : vector<64xi32> to vector<64x1xi32>
      %c2_i32 = arith.constant 2 : i32
      %64 = vector.broadcast %c2_i32 : i32 to vector<64x4xi32>
      %65 = arith.cmpi eq, %1, %64 : vector<64x4xi32>
      %66 = vector.shape_cast %57 : vector<64x1xf32> to vector<64x1xf32>
      %67 = vector.broadcast %66 : vector<64x1xf32> to vector<64x4xf32>
      %68 = arith.select %65, %67, %46 : vector<64x4xi1>, vector<64x4xf32>
      %c2_i32_20 = arith.constant 2 : i32
      %69 = vector.broadcast %c2_i32_20 : i32 to vector<64x4xi32>
      %70 = arith.cmpi eq, %1, %69 : vector<64x4xi32>
      %71 = vector.shape_cast %63 : vector<64x1xi32> to vector<64x1xi32>
      %72 = vector.broadcast %71 : vector<64x1xi32> to vector<64x4xi32>
      %73 = arith.select %70, %72, %51 : vector<64x4xi1>, vector<64x4xi32>
      %74 = vector.broadcast %63 : vector<64x1xi32> to vector<64x64xi32>
      %75 = arith.cmpi eq, %0, %74 : vector<64x64xi32>
      %cst_21 = arith.constant 0xFF800000 : f32
      %76 = vector.broadcast %cst_21 : f32 to vector<64x64xf32>
      %77 = arith.select %75, %76, %55 : vector<64x64xi1>, vector<64x64xf32>
      %cst_22 = arith.constant dense<0xFF800000> : vector<64xf32>
      %78 = vector.multi_reduction <maximumf>, %77, %cst_22 [1] : vector<64x64xf32> to vector<64xf32>
      %79 = vector.shape_cast %78 : vector<64xf32> to vector<64x1xf32>
      %80 = vector.broadcast %79 : vector<64x1xf32> to vector<64x64xf32>
      %81 = arith.cmpf oeq, %77, %80 : vector<64x64xf32>
      %c64_i32_23 = arith.constant 64 : i32
      %82 = vector.broadcast %c64_i32_23 : i32 to vector<64x64xi32>
      %83 = arith.select %81, %0, %82 : vector<64x64xi1>, vector<64x64xi32>
      %cst_24 = arith.constant dense<2147483647> : vector<64xi32>
      %84 = vector.multi_reduction <minsi>, %83, %cst_24 [1] : vector<64x64xi32> to vector<64xi32>
      %85 = vector.shape_cast %84 : vector<64xi32> to vector<64x1xi32>
      %c3_i32 = arith.constant 3 : i32
      %86 = vector.broadcast %c3_i32 : i32 to vector<64x4xi32>
      %87 = arith.cmpi eq, %1, %86 : vector<64x4xi32>
      %88 = vector.shape_cast %79 : vector<64x1xf32> to vector<64x1xf32>
      %89 = vector.broadcast %88 : vector<64x1xf32> to vector<64x4xf32>
      %90 = arith.select %87, %89, %68 : vector<64x4xi1>, vector<64x4xf32>
      %c3_i32_25 = arith.constant 3 : i32
      %91 = vector.broadcast %c3_i32_25 : i32 to vector<64x4xi32>
      %92 = arith.cmpi eq, %1, %91 : vector<64x4xi32>
      %93 = vector.shape_cast %85 : vector<64x1xi32> to vector<64x1xi32>
      %94 = vector.broadcast %93 : vector<64x1xi32> to vector<64x4xi32>
      %95 = arith.select %92, %94, %73 : vector<64x4xi1>, vector<64x4xi32>
      %cst_26 = arith.constant 0.176776692 : f32
      %96 = vector.broadcast %cst_26 : f32 to vector<64x4xf32>
      %97 = arith.mulf %90, %96 : vector<64x4xf32>
      %98 = vector.extract_strided_slice %97 {offsets = [0, 0], sizes = [64, 1], strides = [1, 1]} : vector<64x4xf32> to vector<64x1xf32>
      %99 = vector.broadcast %98 : vector<64x1xf32> to vector<64x4xf32>
      %100 = arith.subf %97, %99 : vector<64x4xf32>
      %101 = math.exp %100 : vector<64x4xf32>
      %cst_27 = arith.constant dense<0.000000e+00> : vector<64xf32>
      %102 = vector.multi_reduction <add>, %101, %cst_27 [1] : vector<64x4xf32> to vector<64xf32>
      %103 = vector.shape_cast %102 : vector<64xf32> to vector<64x1xf32>
      %104 = vector.broadcast %103 : vector<64x1xf32> to vector<64x4xf32>
      %105 = arith.divf %101, %104 : vector<64x4xf32>
      %106 = arith.index_cast %arg5 : i32 to index
      %c0_28 = arith.constant 0 : index
      %c0_29 = arith.constant 0 : index
      %107 = vector.load %arg3[%106, %c0_28, %c0_29] : memref<8x64x4xf32, #tpu.memory_space<vmem>>, vector<1x64x4xf32>
      %108 = vector.shape_cast %107 : vector<1x64x4xf32> to vector<64x4xf32>
      %109 = vector.shape_cast %105 : vector<64x4xf32> to vector<1x64x4xf32>
      tpu.vector_store %arg3[%106, %c0_28, %c0_29], %109 {strides = array<i32>} : memref<8x64x4xf32, #tpu.memory_space<vmem>>, vector<1x64x4xf32>,
      %110 = arith.index_cast %arg5 : i32 to index
      %c0_30 = arith.constant 0 : index
      %c0_31 = arith.constant 0 : index
      %111 = vector.load %arg4[%110, %c0_30, %c0_31] : memref<8x64x4xi32, #tpu.memory_space<vmem>>, vector<1x64x4xi32>
      %112 = vector.shape_cast %111 : vector<1x64x4xi32> to vector<64x4xi32>
      %113 = vector.shape_cast %95 : vector<64x4xi32> to vector<1x64x4xi32>
      tpu.vector_store %arg4[%110, %c0_30, %c0_31], %113 {strides = array<i32>} : memref<8x64x4xi32, #tpu.memory_space<vmem>>, vector<1x64x4xi32>,
    }
    %c8_i32_0 = arith.constant 8 : i32
    return
  }
  func.func @transform_0(%arg0: i32) -> (i32, i32, i32) {
    %c0_i32 = arith.constant 0 : i32
    %c0_i32_0 = arith.constant 0 : i32
    %c0_i32_1 = arith.constant 0 : i32
    return %arg0, %c0_i32, %c0_i32_0 : i32, i32, i32
  }
  func.func @transform_1(%arg0: i32) -> (i32, i32, i32) {
    %c0_i32 = arith.constant 0 : i32
    %c0_i32_0 = arith.constant 0 : i32
    %c0_i32_1 = arith.constant 0 : i32
    return %arg0, %c0_i32, %c0_i32_0 : i32, i32, i32
  }
  func.func @transform_2(%arg0: i32) -> (i32, i32, i32) {
    %c0_i32 = arith.constant 0 : i32
    %c0_i32_0 = arith.constant 0 : i32
    %c0_i32_1 = arith.constant 0 : i32
    return %arg0, %c0_i32, %c0_i32_0 : i32, i32, i32
  }
  func.func @transform_3(%arg0: i32) -> (i32, i32, i32) {
    %c0_i32 = arith.constant 0 : i32
    %c0_i32_0 = arith.constant 0 : i32
    %c0_i32_1 = arith.constant 0 : i32
    return %arg0, %c0_i32, %c0_i32_0 : i32, i32, i32
  }
}

</mosaic_0001>

<llo_original>
// kernel: tpu_custom_call.1
$region0: #{tpu_custom_call.1}
  #allocation0 [shape = 'u32[]', space=smem, size = 0x4, offset = 0x4, fixed_abs, tag = 'smem constant byte address 0x4 - core index']
  #allocation1 [shape = 'u32[144,128]{1,0:T(1,128)}', space=vmem, size = 0x12000, scoped, tag = 'internal scratch']
  %s0 = inlined_call_operand.vmem [shape: f32[8,64,32], index: 0, kind: input, shape index: {}]
  %s1 = inlined_call_operand.vmem [shape: f32[8,64,32], index: 1, kind: input, shape index: {}]
  %s2 = inlined_call_operand.vmem [shape: f32[8,64,4], index: 2, kind: output, shape index: {0}]
  %s3 = inlined_call_operand.vmem [shape: s32[8,64,4], index: 3, kind: output, shape index: {1}]
  %4 = xla_tuple %s2, %s3
  %s5 = sld [smem:[#allocation0]]
  $region33: #{tpu_custom_call.1} parent=0
    _
  %s7 = ssub.s32 1, %s5
  %s8 = scalar_select 0, %s7, %s5
  // Predicated region
  $region2: #{tpu_custom_call.1} parent=0 // pred_check
    _
  $region3: #{tpu_custom_call.1} parent=0 // pred_check_branch
    %10 = sbr.rel (0) target = $region5
  $region4: #{tpu_custom_call.1} parent=0 // pred_region
    _
  $region5: #{tpu_custom_call.1} parent=0 // pred_fallthru
    _
  // Predicated region
  $region6: #{tpu_custom_call.1} parent=0 // pred_check
    _
  $region7: #{tpu_custom_call.1} parent=0 // pred_check_branch
    %12 = sbr.rel (0) target = $region9
  $region8: #{tpu_custom_call.1} parent=0 // pred_region
    _
  $region9: #{tpu_custom_call.1} parent=0 // pred_fallthru
    _
  %v13 = vlaneseq
  %v14 = vand.u32 %v13, 127
  loop: start=0, step=1, limit=8
  $region10: #{tpu_custom_call.1} parent=0 // loop_pre_header
    _
  $region11: #{tpu_custom_call.1} parent=0 // loop_header
    %s16 = sphi 0, %s20
    %p17 = scmp.ge.s32.totalorder %s16, 8
  $region12: #{tpu_custom_call.1} parent=0 // loop_header_branch
    %19 = sbr.rel (%p17) target = $region16
  $region13: #{tpu_custom_call.1} parent=0 // loop_body
    %s21 = smul.u32 %s16, 64
    %s22 = scalar_lea.vmem %s0, %s21
    %v23 = vld [vmem:[%s22] sm:$0xff]
    %v24 = vld [vmem:[%s22 + $0x8] sm:$0xff]
    %v25 = vld [vmem:[%s22 + $0x10] sm:$0xff]
    %v26 = vld [vmem:[%s22 + $0x18] sm:$0xff]
    %v27 = vld [vmem:[%s22 + $0x20] sm:$0xff]
    %v28 = vld [vmem:[%s22 + $0x28] sm:$0xff]
    %v29 = vld [vmem:[%s22 + $0x30] sm:$0xff]
    %v30 = vld [vmem:[%s22 + $0x38] sm:$0xff]
    %s31 = scalar_lea.vmem %s1, %s21
    %v32 = vld [vmem:[%s31] sm:$0xff]
    %v33 = vld [vmem:[%s31 + $0x8] sm:$0xff]
    %v34 = vld [vmem:[%s31 + $0x10] sm:$0xff]
    %v35 = vld [vmem:[%s31 + $0x18] sm:$0xff]
    %v36 = vld [vmem:[%s31 + $0x20] sm:$0xff]
    %v37 = vld [vmem:[%s31 + $0x28] sm:$0xff]
    %v38 = vld [vmem:[%s31 + $0x30] sm:$0xff]
    %v39 = vld [vmem:[%s31 + $0x38] sm:$0xff]
    %vm40 = vcmask 261120
    %v42 = vsel %vm40, %v23, 0
    %v45 = vsel %vm40, %v24, 0
    %v48 = vsel %vm40, %v25, 0
    %v51 = vsel %vm40, %v26, 0
    %v54 = vsel %vm40, %v27, 0
    %v57 = vsel %vm40, %v28, 0
    %v60 = vsel %vm40, %v29, 0
    %v63 = vsel %vm40, %v30, 0
    %v66 = vsel %vm40, %v32, 0
    %v69 = vsel %vm40, %v33, 0
    %v72 = vsel %vm40, %v34, 0
    %v75 = vsel %vm40, %v35, 0
    %v78 = vsel %vm40, %v36, 0
    %v81 = vsel %vm40, %v37, 0
    %v84 = vsel %vm40, %v38, 0
    %v87 = vsel %vm40, %v39, 0
    %89 = vmatprep.subr.mxu0 0.0
    %90 = vmatpush1.xpose.msra.mxu0 %v66
    %91 = vmatprep.subr.mxu0 0.0
    %92 = vmatpush1.xpose.msra.mxu0 %v69
    %93 = vmatprep.subr.mxu0 0.0
    %94 = vmatpush1.xpose.msra.mxu0 %v72
    %95 = vmatprep.subr.mxu0 0.0
    %96 = vmatpush1.xpose.msra.mxu0 %v75
    %97 = vmatprep.subr.mxu0 0.0
    %98 = vmatpush1.xpose.msra.mxu0 %v78
    %99 = vmatprep.subr.mxu0 0.0
    %100 = vmatpush1.xpose.msra.mxu0 %v81
    %101 = vmatprep.subr.mxu0 0.0
    %102 = vmatpush1.xpose.msra.mxu0 %v84
    %103 = vmatprep.subr.mxu0 0.0
    %104 = vmatpush1.xpose.msra.mxu0 %v87
    %105 = vmatprep.subr.mxu0 0.0
    %106 = vmatpush1.xpose.msra.mxu0 0.0
    %107 = vmatprep.subr.mxu0 0.0
    %108 = vmatpush1.xpose.msra.mxu0 0.0
    %109 = vmatprep.subr.mxu0 0.0
    %110 = vmatpush1.xpose.msra.mxu0 0.0
    %111 = vmatprep.subr.mxu0 0.0
    %112 = vmatpush1.xpose.msra.mxu0 0.0
    %113 = vmatprep.subr.mxu0 0.0
    %114 = vmatpush1.xpose.msra.mxu0 0.0
    %115 = vmatprep.subr.mxu0 0.0
    %116 = vmatpush1.xpose.msra.mxu0 0.0
    %117 = vmatprep.subr.mxu0 0.0
    %118 = vmatpush1.xpose.msra.mxu0 0.0
    %119 = vmatprep.subr.mxu0 0.0
    %120 = vmatpush1.xpose.msra.mxu0 0.0
    %121 = vmatprep.subr.mxu0 0.0
    %122 = vmatpush1.xpose.msra.mxu0 0.0
    %123 = vmatprep.subr.mxu0 0.0
    %124 = vmatpush1.xpose.msra.mxu0 0.0
    %125 = vmatprep.subr.mxu0 0.0
    %126 = vmatpush1.xpose.msra.mxu0 0.0
    %127 = vmatprep.subr.mxu0 0.0
    %128 = vmatpush1.xpose.msra.mxu0 0.0
    %129 = vmatprep.subr.mxu0 0.0
    %130 = vmatpush1.xpose.msra.mxu0 0.0
    %131 = vmatprep.subr.mxu0 0.0
    %132 = vmatpush1.xpose.msra.mxu0 0.0
    %133 = vmatprep.subr.mxu0 0.0
    %134 = vmatpush1.xpose.msra.mxu0 0.0
    %135 = vmatprep.subr.mxu0 0.0
    %136 = vmatpush1.xpose.msra.mxu0 0.0
    %137 = vmatprep.subr.mxu0 0.0
    %138 = vmatpush1.xpose.msra.mxu0 0.0
    %139 = vmatprep.subr.mxu0 0.0
    %140 = vmatpush1.xpose.msra.mxu0 0.0
    %141 = vmatprep.subr.mxu0 0.0
    %142 = vmatpush1.xpose.msra.mxu0 0.0
    %143 = vmatprep.subr.mxu0 0.0
    %144 = vmatpush1.xpose.msra.mxu0 0.0
    %145 = vmatprep.subr.mxu0 0.0
    %146 = vmatpush1.xpose.msra.mxu0 0.0
    %147 = vmatprep.subr.mxu0 0.0
    %148 = vmatpush1.xpose.msra.mxu0 0.0
    %149 = vmatprep.subr.mxu0 0.0
    %150 = vmatpush1.xpose.msra.mxu0 0.0
    %151 = vmatprep.subr.mxu0 0.0
    %152 = vmatpush1.xpose.msra.mxu0 0.0
    %153 = vmatprep.mubr.f32.mxu0 0.0
    %154 = vmatmul.mubr.f32.gmra.mrb[0].mxu0 %v42
    %v155 = vpop.f32.mrb[0].mxu0
    %v156 = vadd.f32 0.0, %v155
    %v157 = vpop.f32.mrb[0].mxu0
    %158 = vmatprep.mubr.f32.mxu0 0.0
    %159 = vmatmul.mubr.f32.gmra.mrb[0].mxu0 %v45
    %v160 = vpop.f32.mrb[0].mxu0
    %v161 = vadd.f32 0.0, %v160
    %v162 = vpop.f32.mrb[0].mxu0
    %163 = vmatprep.mubr.f32.mxu0 0.0
    %164 = vmatmul.mubr.f32.gmra.mrb[0].mxu0 %v48
    %v165 = vpop.f32.mrb[0].mxu0
    %v166 = vadd.f32 0.0, %v165
    %v167 = vpop.f32.mrb[0].mxu0
    %168 = vmatprep.mubr.f32.mxu0 0.0
    %169 = vmatmul.mubr.f32.gmra.mrb[0].mxu0 %v51
    %v170 = vpop.f32.mrb[0].mxu0
    %v171 = vadd.f32 0.0, %v170
    %v172 = vpop.f32.mrb[0].mxu0
    %173 = vmatprep.mubr.f32.mxu0 0.0
    %174 = vmatmul.mubr.f32.gmra.mrb[0].mxu0 %v54
    %v175 = vpop.f32.mrb[0].mxu0
    %v176 = vadd.f32 0.0, %v175
    %v177 = vpop.f32.mrb[0].mxu0
    %178 = vmatprep.mubr.f32.mxu0 0.0
    %179 = vmatmul.mubr.f32.gmra.mrb[0].mxu0 %v57
    %v180 = vpop.f32.mrb[0].mxu0
    %v181 = vadd.f32 0.0, %v180
    %v182 = vpop.f32.mrb[0].mxu0
    %183 = vmatprep.mubr.f32.mxu0 0.0
    %184 = vmatmul.mubr.f32.gmra.mrb[0].mxu0 %v60
    %v185 = vpop.f32.mrb[0].mxu0
    %v186 = vadd.f32 0.0, %v185
    %v187 = vpop.f32.mrb[0].mxu0
    %188 = vmatprep.mubr.f32.mxu0 0.0
    %189 = vmatmul.mubr.f32.gmra.mrb[0].mxu0 %v63
    %v190 = vpop.f32.mrb[0].mxu0
    %v191 = vadd.f32 0.0, %v190
    %v192 = vpop.f32.mrb[0].mxu0
    %193 = vdwg.mxu0
    %vm194 = vcmask 523264
    %v195 = vsel %vm194, %v156, -inf
    %196 = vmax.xlane.f32.xlu0 %v195
    %v197 = vpop.xlane.xlu0 %196
    %v198 = vsel %vm194, %v161, -inf
    %199 = vmax.xlane.f32.xlu0 %v198
    %v200 = vpop.xlane.xlu0 %199
    %v201 = vsel %vm194, %v166, -inf
    %202 = vmax.xlane.f32.xlu0 %v201
    %v203 = vpop.xlane.xlu0 %202
    %v204 = vsel %vm194, %v171, -inf
    %205 = vmax.xlane.f32.xlu0 %v204
    %v206 = vpop.xlane.xlu0 %205
    %v207 = vsel %vm194, %v176, -inf
    %208 = vmax.xlane.f32.xlu0 %v207
    %v209 = vpop.xlane.xlu0 %208
    %v210 = vsel %vm194, %v181, -inf
    %211 = vmax.xlane.f32.xlu0 %v210
    %v212 = vpop.xlane.xlu0 %211
    %v213 = vsel %vm194, %v186, -inf
    %214 = vmax.xlane.f32.xlu0 %v213
    %v215 = vpop.xlane.xlu0 %214
    %v216 = vsel %vm194, %v191, -inf
    %217 = vmax.xlane.f32.xlu0 %v216
    %v218 = vpop.xlane.xlu0 %217
    %vm219 = vcmp.eq.f32.partialorder %v156, %v197
    %vm220 = vcmp.eq.f32.partialorder %v161, %v200
    %vm221 = vcmp.eq.f32.partialorder %v166, %v203
    %vm222 = vcmp.eq.f32.partialorder %v171, %v206
    %vm223 = vcmp.eq.f32.partialorder %v176, %v209
    %vm224 = vcmp.eq.f32.partialorder %v181, %v212
    %vm225 = vcmp.eq.f32.partialorder %v186, %v215
    %vm226 = vcmp.eq.f32.partialorder %v191, %v218
    %v227 = vsel %vm219, %v14, 64
    %v228 = vsel %vm220, %v14, 64
    %v229 = vsel %vm221, %v14, 64
    %v230 = vsel %vm222, %v14, 64
    %v231 = vsel %vm223, %v14, 64
    %v232 = vsel %vm224, %v14, 64
    %v233 = vsel %vm225, %v14, 64
    %v234 = vsel %vm226, %v14, 64
    %v235 = vsel %vm194, %v227, 2147483647
    %v236 = vand.u32 %v235, 65535
    %v237 = vshra.s32 %v235, 16
    %v238 = vcvt.s32.f32 %v236
    %v239 = vcvt.s32.f32 %v237
    %240 = vmin.xlane.f32.xlu0 %v239
    %v241 = vpop.xlane.xlu0 %240
    %vm242 = vcmp.eq.f32.partialorder %v239, %v241
    %v243 = vsel %vm242, %v238, inf
    %244 = vmin.xlane.f32.xlu0 %v243
    %v245 = vpop.xlane.xlu0 %244
    %v246 = vcvt.f32.s32 %v245
    %v247 = vcvt.f32.s32 %v241
    %v248 = vshll.u32 %v247, 16
    %v249 = vadd.s32 %v248, %v246
    %v250 = vsel %vm194, %v228, 2147483647
    %v251 = vand.u32 %v250, 65535
    %v252 = vshra.s32 %v250, 16
    %v253 = vcvt.s32.f32 %v251
    %v254 = vcvt.s32.f32 %v252
    %255 = vmin.xlane.f32.xlu0 %v254
    %v256 = vpop.xlane.xlu0 %255
    %vm257 = vcmp.eq.f32.partialorder %v254, %v256
    %v258 = vsel %vm257, %v253, inf
    %259 = vmin.xlane.f32.xlu0 %v258
    %v260 = vpop.xlane.xlu0 %259
    %v261 = vcvt.f32.s32 %v260
    %v262 = vcvt.f32.s32 %v256
    %v263 = vshll.u32 %v262, 16
    %v264 = vadd.s32 %v263, %v261
    %v265 = vsel %vm194, %v229, 2147483647
    %v266 = vand.u32 %v265, 65535
    %v267 = vshra.s32 %v265, 16
    %v268 = vcvt.s32.f32 %v266
    %v269 = vcvt.s32.f32 %v267
    %270 = vmin.xlane.f32.xlu0 %v269
    %v271 = vpop.xlane.xlu0 %270
    %vm272 = vcmp.eq.f32.partialorder %v269, %v271
    %v273 = vsel %vm272, %v268, inf
    %274 = vmin.xlane.f32.xlu0 %v273
    %v275 = vpop.xlane.xlu0 %274
    %v276 = vcvt.f32.s32 %v275
    %v277 = vcvt.f32.s32 %v271
    %v278 = vshll.u32 %v277, 16
    %v279 = vadd.s32 %v278, %v276
    %v280 = vsel %vm194, %v230, 2147483647
    %v281 = vand.u32 %v280, 65535
    %v282 = vshra.s32 %v280, 16
    %v283 = vcvt.s32.f32 %v281
    %v284 = vcvt.s32.f32 %v282
    %285 = vmin.xlane.f32.xlu0 %v284
    %v286 = vpop.xlane.xlu0 %285
    %vm287 = vcmp.eq.f32.partialorder %v284, %v286
    %v288 = vsel %vm287, %v283, inf
    %289 = vmin.xlane.f32.xlu0 %v288
    %v290 = vpop.xlane.xlu0 %289
    %v291 = vcvt.f32.s32 %v290
    %v292 = vcvt.f32.s32 %v286
    %v293 = vshll.u32 %v292, 16
    %v294 = vadd.s32 %v293, %v291
    %v295 = vsel %vm194, %v231, 2147483647
    %v296 = vand.u32 %v295, 65535
    %v297 = vshra.s32 %v295, 16
    %v298 = vcvt.s32.f32 %v296
    %v299 = vcvt.s32.f32 %v297
    %300 = vmin.xlane.f32.xlu0 %v299
    %v301 = vpop.xlane.xlu0 %300
    %vm302 = vcmp.eq.f32.partialorder %v299, %v301
    %v303 = vsel %vm302, %v298, inf
    %304 = vmin.xlane.f32.xlu0 %v303
    %v305 = vpop.xlane.xlu0 %304
    %v306 = vcvt.f32.s32 %v305
    %v307 = vcvt.f32.s32 %v301
    %v308 = vshll.u32 %v307, 16
    %v309 = vadd.s32 %v308, %v306
    %v310 = vsel %vm194, %v232, 2147483647
    %v311 = vand.u32 %v310, 65535
    %v312 = vshra.s32 %v310, 16
    %v313 = vcvt.s32.f32 %v311
    %v314 = vcvt.s32.f32 %v312
    %315 = vmin.xlane.f32.xlu0 %v314
    %v316 = vpop.xlane.xlu0 %315
    %vm317 = vcmp.eq.f32.partialorder %v314, %v316
    %v318 = vsel %vm317, %v313, inf
    %319 = vmin.xlane.f32.xlu0 %v318
    %v320 = vpop.xlane.xlu0 %319
    %v321 = vcvt.f32.s32 %v320
    %v322 = vcvt.f32.s32 %v316
    %v323 = vshll.u32 %v322, 16
    %v324 = vadd.s32 %v323, %v321
    %v325 = vsel %vm194, %v233, 2147483647
    %v326 = vand.u32 %v325, 65535
    %v327 = vshra.s32 %v325, 16
    %v328 = vcvt.s32.f32 %v326
    %v329 = vcvt.s32.f32 %v327
    %330 = vmin.xlane.f32.xlu0 %v329
    %v331 = vpop.xlane.xlu0 %330
    %vm332 = vcmp.eq.f32.partialorder %v329, %v331
    %v333 = vsel %vm332, %v328, inf
    %334 = vmin.xlane.f32.xlu0 %v333
    %v335 = vpop.xlane.xlu0 %334
    %v336 = vcvt.f32.s32 %v335
    %v337 = vcvt.f32.s32 %v331
    %v338 = vshll.u32 %v337, 16
    %v339 = vadd.s32 %v338, %v336
    %v340 = vsel %vm194, %v234, 2147483647
    %v341 = vand.u32 %v340, 65535
    %v342 = vshra.s32 %v340, 16
    %v343 = vcvt.s32.f32 %v341
    %v344 = vcvt.s32.f32 %v342
    %345 = vmin.xlane.f32.xlu0 %v344
    %v346 = vpop.xlane.xlu0 %345
    %vm347 = vcmp.eq.f32.partialorder %v344, %v346
    %v348 = vsel %vm347, %v343, inf
    %349 = vmin.xlane.f32.xlu0 %v348
    %v350 = vpop.xlane.xlu0 %349
    %v351 = vcvt.f32.s32 %v350
    %v352 = vcvt.f32.s32 %v346
    %v353 = vshll.u32 %v352, 16
    %v354 = vadd.s32 %v353, %v351
    %vm355 = vcmp.eq.s32.totalorder %v14, 0
    %v356 = vsel %vm355, %v197, 0.0
    %v357 = vsel %vm355, %v200, 0.0
    %v358 = vsel %vm355, %v203, 0.0
    %v359 = vsel %vm355, %v206, 0.0
    %v360 = vsel %vm355, %v209, 0.0
    %v361 = vsel %vm355, %v212, 0.0
    %v362 = vsel %vm355, %v215, 0.0
    %v363 = vsel %vm355, %v218, 0.0
    %v364 = vsel %vm355, %v249, 0
    %v365 = vsel %vm355, %v264, 0
    %v366 = vsel %vm355, %v279, 0
    %v367 = vsel %vm355, %v294, 0
    %v368 = vsel %vm355, %v309, 0
    %v369 = vsel %vm355, %v324, 0
    %v370 = vsel %vm355, %v339, 0
    %v371 = vsel %vm355, %v354, 0
    %vm372 = vcmp.eq.s32.totalorder %v14, %v249
    %vm373 = vcmp.eq.s32.totalorder %v14, %v264
    %vm374 = vcmp.eq.s32.totalorder %v14, %v279
    %vm375 = vcmp.eq.s32.totalorder %v14, %v294
    %vm376 = vcmp.eq.s32.totalorder %v14, %v309
    %vm377 = vcmp.eq.s32.totalorder %v14, %v324
    %vm378 = vcmp.eq.s32.totalorder %v14, %v339
    %vm379 = vcmp.eq.s32.totalorder %v14, %v354
    %v380 = vsel %vm372, -inf, %v156
    %v381 = vsel %vm373, -inf, %v161
    %v382 = vsel %vm374, -inf, %v166
    %v383 = vsel %vm375, -inf, %v171
    %v384 = vsel %vm376, -inf, %v176
    %v385 = vsel %vm377, -inf, %v181
    %v386 = vsel %vm378, -inf, %v186
    %v387 = vsel %vm379, -inf, %v191
    %v388 = vsel %vm194, %v380, -inf
    %389 = vmax.xlane.f32.xlu0 %v388
    %v390 = vpop.xlane.xlu0 %389
    %v391 = vsel %vm194, %v381, -inf
    %392 = vmax.xlane.f32.xlu0 %v391
    %v393 = vpop.xlane.xlu0 %392
    %v394 = vsel %vm194, %v382, -inf
    %395 = vmax.xlane.f32.xlu0 %v394
    %v396 = vpop.xlane.xlu0 %395
    %v397 = vsel %vm194, %v383, -inf
    %398 = vmax.xlane.f32.xlu0 %v397
    %v399 = vpop.xlane.xlu0 %398
    %v400 = vsel %vm194, %v384, -inf
    %401 = vmax.xlane.f32.xlu0 %v400
    %v402 = vpop.xlane.xlu0 %401
    %v403 = vsel %vm194, %v385, -inf
    %404 = vmax.xlane.f32.xlu0 %v403
    %v405 = vpop.xlane.xlu0 %404
    %v406 = vsel %vm194, %v386, -inf
    %407 = vmax.xlane.f32.xlu0 %v406
    %v408 = vpop.xlane.xlu0 %407
    %v409 = vsel %vm194, %v387, -inf
    %410 = vmax.xlane.f32.xlu0 %v409
    %v411 = vpop.xlane.xlu0 %410
    %vm412 = vcmp.eq.f32.partialorder %v380, %v390
    %vm413 = vcmp.eq.f32.partialorder %v381, %v393
    %vm414 = vcmp.eq.f32.partialorder %v382, %v396
    %vm415 = vcmp.eq.f32.partialorder %v383, %v399
    %vm416 = vcmp.eq.f32.partialorder %v384, %v402
    %vm417 = vcmp.eq.f32.partialorder %v385, %v405
    %vm418 = vcmp.eq.f32.partialorder %v386, %v408
    %vm419 = vcmp.eq.f32.partialorder %v387, %v411
    %v420 = vsel %vm412, %v14, 64
    %v421 = vsel %vm413, %v14, 64
    %v422 = vsel %vm414, %v14, 64
    %v423 = vsel %vm415, %v14, 64
    %v424 = vsel %vm416, %v14, 64
    %v425 = vsel %vm417, %v14, 64
    %v426 = vsel %vm418, %v14, 64
    %v427 = vsel %vm419, %v14, 64
    %v428 = vsel %vm194, %v420, 2147483647
    %v429 = vand.u32 %v428, 65535
    %v430 = vshra.s32 %v428, 16
    %v431 = vcvt.s32.f32 %v429
    %v432 = vcvt.s32.f32 %v430
    %433 = vmin.xlane.f32.xlu0 %v432
    %v434 = vpop.xlane.xlu0 %433
    %vm435 = vcmp.eq.f32.partialorder %v432, %v434
    %v436 = vsel %vm435, %v431, inf
    %437 = vmin.xlane.f32.xlu0 %v436
    %v438 = vpop.xlane.xlu0 %437
    %v439 = vcvt.f32.s32 %v438
    %v440 = vcvt.f32.s32 %v434
    %v441 = vshll.u32 %v440, 16
    %v442 = vadd.s32 %v441, %v439
    %v443 = vsel %vm194, %v421, 2147483647
    %v444 = vand.u32 %v443, 65535
    %v445 = vshra.s32 %v443, 16
    %v446 = vcvt.s32.f32 %v444
    %v447 = vcvt.s32.f32 %v445
    %448 = vmin.xlane.f32.xlu0 %v447
    %v449 = vpop.xlane.xlu0 %448
    %vm450 = vcmp.eq.f32.partialorder %v447, %v449
    %v451 = vsel %vm450, %v446, inf
    %452 = vmin.xlane.f32.xlu0 %v451
    %v453 = vpop.xlane.xlu0 %452
    %v454 = vcvt.f32.s32 %v453
    %v455 = vcvt.f32.s32 %v449
    %v456 = vshll.u32 %v455, 16
    %v457 = vadd.s32 %v456, %v454
    %v458 = vsel %vm194, %v422, 2147483647
    %v459 = vand.u32 %v458, 65535
    %v460 = vshra.s32 %v458, 16
    %v461 = vcvt.s32.f32 %v459
    %v462 = vcvt.s32.f32 %v460
    %463 = vmin.xlane.f32.xlu0 %v462
    %v464 = vpop.xlane.xlu0 %463
    %vm465 = vcmp.eq.f32.partialorder %v462, %v464
    %v466 = vsel %vm465, %v461, inf
    %467 = vmin.xlane.f32.xlu0 %v466
    %v468 = vpop.xlane.xlu0 %467
    %v469 = vcvt.f32.s32 %v468
    %v470 = vcvt.f32.s32 %v464
    %v471 = vshll.u32 %v470, 16
    %v472 = vadd.s32 %v471, %v469
    %v473 = vsel %vm194, %v423, 2147483647
    %v474 = vand.u32 %v473, 65535
    %v475 = vshra.s32 %v473, 16
    %v476 = vcvt.s32.f32 %v474
    %v477 = vcvt.s32.f32 %v475
    %478 = vmin.xlane.f32.xlu0 %v477
    %v479 = vpop.xlane.xlu0 %478
    %vm480 = vcmp.eq.f32.partialorder %v477, %v479
    %v481 = vsel %vm480, %v476, inf
    %482 = vmin.xlane.f32.xlu0 %v481
    %v483 = vpop.xlane.xlu0 %482
    %v484 = vcvt.f32.s32 %v483
    %v485 = vcvt.f32.s32 %v479
    %v486 = vshll.u32 %v485, 16
    %v487 = vadd.s32 %v486, %v484
    %v488 = vsel %vm194, %v424, 2147483647
    %v489 = vand.u32 %v488, 65535
    %v490 = vshra.s32 %v488, 16
    %v491 = vcvt.s32.f32 %v489
    %v492 = vcvt.s32.f32 %v490
    %493 = vmin.xlane.f32.xlu0 %v492
    %v494 = vpop.xlane.xlu0 %493
    %vm495 = vcmp.eq.f32.partialorder %v492, %v494
    %v496 = vsel %vm495, %v491, inf
    %497 = vmin.xlane.f32.xlu0 %v496
    %v498 = vpop.xlane.xlu0 %497
    %v499 = vcvt.f32.s32 %v498
    %v500 = vcvt.f32.s32 %v494
    %v501 = vshll.u32 %v500, 16
    %v502 = vadd.s32 %v501, %v499
    %v503 = vsel %vm194, %v425, 2147483647
    %v504 = vand.u32 %v503, 65535
    %v505 = vshra.s32 %v503, 16
    %v506 = vcvt.s32.f32 %v504
    %v507 = vcvt.s32.f32 %v505
    %508 = vmin.xlane.f32.xlu0 %v507
    %v509 = vpop.xlane.xlu0 %508
    %vm510 = vcmp.eq.f32.partialorder %v507, %v509
    %v511 = vsel %vm510, %v506, inf
    %512 = vmin.xlane.f32.xlu0 %v511
    %v513 = vpop.xlane.xlu0 %512
    %v514 = vcvt.f32.s32 %v513
    %v515 = vcvt.f32.s32 %v509
    %v516 = vshll.u32 %v515, 16
    %v517 = vadd.s32 %v516, %v514
    %v518 = vsel %vm194, %v426, 2147483647
    %v519 = vand.u32 %v518, 65535
    %v520 = vshra.s32 %v518, 16
    %v521 = vcvt.s32.f32 %v519
    %v522 = vcvt.s32.f32 %v520
    %523 = vmin.xlane.f32.xlu0 %v522
    %v524 = vpop.xlane.xlu0 %523
    %vm525 = vcmp.eq.f32.partialorder %v522, %v524
    %v526 = vsel %vm525, %v521, inf
    %527 = vmin.xlane.f32.xlu0 %v526
    %v528 = vpop.xlane.xlu0 %527
    %v529 = vcvt.f32.s32 %v528
    %v530 = vcvt.f32.s32 %v524
    %v531 = vshll.u32 %v530, 16
    %v532 = vadd.s32 %v531, %v529
    %v533 = vsel %vm194, %v427, 2147483647
    %v534 = vand.u32 %v533, 65535
    %v535 = vshra.s32 %v533, 16
    %v536 = vcvt.s32.f32 %v534
    %v537 = vcvt.s32.f32 %v535
    %538 = vmin.xlane.f32.xlu0 %v537
    %v539 = vpop.xlane.xlu0 %538
    %vm540 = vcmp.eq.f32.partialorder %v537, %v539
    %v541 = vsel %vm540, %v536, inf
    %542 = vmin.xlane.f32.xlu0 %v541
    %v543 = vpop.xlane.xlu0 %542
    %v544 = vcvt.f32.s32 %v543
    %v545 = vcvt.f32.s32 %v539
    %v546 = vshll.u32 %v545, 16
    %v547 = vadd.s32 %v546, %v544
    %vm548 = vcmp.eq.s32.totalorder %v14, 1
    %v549 = vsel %vm548, %v390, %v356
    %v550 = vsel %vm548, %v393, %v357
    %v551 = vsel %vm548, %v396, %v358
    %v552 = vsel %vm548, %v399, %v359
    %v553 = vsel %vm548, %v402, %v360
    %v554 = vsel %vm548, %v405, %v361
    %v555 = vsel %vm548, %v408, %v362
    %v556 = vsel %vm548, %v411, %v363
    %v557 = vsel %vm548, %v442, %v364
    %v558 = vsel %vm548, %v457, %v365
    %v559 = vsel %vm548, %v472, %v366
    %v560 = vsel %vm548, %v487, %v367
    %v561 = vsel %vm548, %v502, %v368
    %v562 = vsel %vm548, %v517, %v369
    %v563 = vsel %vm548, %v532, %v370
    %v564 = vsel %vm548, %v547, %v371
    %vm565 = vcmp.eq.s32.totalorder %v14, %v442
    %vm566 = vcmp.eq.s32.totalorder %v14, %v457
    %vm567 = vcmp.eq.s32.totalorder %v14, %v472
    %vm568 = vcmp.eq.s32.totalorder %v14, %v487
    %vm569 = vcmp.eq.s32.totalorder %v14, %v502
    %vm570 = vcmp.eq.s32.totalorder %v14, %v517
    %vm571 = vcmp.eq.s32.totalorder %v14, %v532
    %vm572 = vcmp.eq.s32.totalorder %v14, %v547
    %v573 = vsel %vm565, -inf, %v380
    %v574 = vsel %vm566, -inf, %v381
    %v575 = vsel %vm567, -inf, %v382
    %v576 = vsel %vm568, -inf, %v383
    %v577 = vsel %vm569, -inf, %v384
    %v578 = vsel %vm570, -inf, %v385
    %v579 = vsel %vm571, -inf, %v386
    %v580 = vsel %vm572, -inf, %v387
    %v581 = vsel %vm194, %v573, -inf
    %582 = vmax.xlane.f32.xlu0 %v581
    %v583 = vpop.xlane.xlu0 %582
    %v584 = vsel %vm194, %v574, -inf
    %585 = vmax.xlane.f32.xlu0 %v584
    %v586 = vpop.xlane.xlu0 %585
    %v587 = vsel %vm194, %v575, -inf
    %588 = vmax.xlane.f32.xlu0 %v587
    %v589 = vpop.xlane.xlu0 %588
    %v590 = vsel %vm194, %v576, -inf
    %591 = vmax.xlane.f32.xlu0 %v590
    %v592 = vpop.xlane.xlu0 %591
    %v593 = vsel %vm194, %v577, -inf
    %594 = vmax.xlane.f32.xlu0 %v593
    %v595 = vpop.xlane.xlu0 %594
    %v596 = vsel %vm194, %v578, -inf
    %597 = vmax.xlane.f32.xlu0 %v596
    %v598 = vpop.xlane.xlu0 %597
    %v599 = vsel %vm194, %v579, -inf
    %600 = vmax.xlane.f32.xlu0 %v599
    %v601 = vpop.xlane.xlu0 %600
    %v602 = vsel %vm194, %v580, -inf
    %603 = vmax.xlane.f32.xlu0 %v602
    %v604 = vpop.xlane.xlu0 %603
    %vm605 = vcmp.eq.f32.partialorder %v573, %v583
    %vm606 = vcmp.eq.f32.partialorder %v574, %v586
    %vm607 = vcmp.eq.f32.partialorder %v575, %v589
    %vm608 = vcmp.eq.f32.partialorder %v576, %v592
    %vm609 = vcmp.eq.f32.partialorder %v577, %v595
    %vm610 = vcmp.eq.f32.partialorder %v578, %v598
    %vm611 = vcmp.eq.f32.partialorder %v579, %v601
    %vm612 = vcmp.eq.f32.partialorder %v580, %v604
    %v613 = vsel %vm605, %v14, 64
    %v614 = vsel %vm606, %v14, 64
    %v615 = vsel %vm607, %v14, 64
    %v616 = vsel %vm608, %v14, 64
    %v617 = vsel %vm609, %v14, 64
    %v618 = vsel %vm610, %v14, 64
    %v619 = vsel %vm611, %v14, 64
    %v620 = vsel %vm612, %v14, 64
    %v621 = vsel %vm194, %v613, 2147483647
    %v622 = vand.u32 %v621, 65535
    %v623 = vshra.s32 %v621, 16
    %v624 = vcvt.s32.f32 %v622
    %v625 = vcvt.s32.f32 %v623
    %626 = vmin.xlane.f32.xlu0 %v625
    %v627 = vpop.xlane.xlu0 %626
    %vm628 = vcmp.eq.f32.partialorder %v625, %v627
    %v629 = vsel %vm628, %v624, inf
    %630 = vmin.xlane.f32.xlu0 %v629
    %v631 = vpop.xlane.xlu0 %630
    %v632 = vcvt.f32.s32 %v631
    %v633 = vcvt.f32.s32 %v627
    %v634 = vshll.u32 %v633, 16
    %v635 = vadd.s32 %v634, %v632
    %v636 = vsel %vm194, %v614, 2147483647
    %v637 = vand.u32 %v636, 65535
    %v638 = vshra.s32 %v636, 16
    %v639 = vcvt.s32.f32 %v637
    %v640 = vcvt.s32.f32 %v638
    %641 = vmin.xlane.f32.xlu0 %v640
    %v642 = vpop.xlane.xlu0 %641
    %vm643 = vcmp.eq.f32.partialorder %v640, %v642
    %v644 = vsel %vm643, %v639, inf
    %645 = vmin.xlane.f32.xlu0 %v644
    %v646 = vpop.xlane.xlu0 %645
    %v647 = vcvt.f32.s32 %v646
    %v648 = vcvt.f32.s32 %v642
    %v649 = vshll.u32 %v648, 16
    %v650 = vadd.s32 %v649, %v647
    %v651 = vsel %vm194, %v615, 2147483647
    %v652 = vand.u32 %v651, 65535
    %v653 = vshra.s32 %v651, 16
    %v654 = vcvt.s32.f32 %v652
    %v655 = vcvt.s32.f32 %v653
    %656 = vmin.xlane.f32.xlu0 %v655
    %v657 = vpop.xlane.xlu0 %656
    %vm658 = vcmp.eq.f32.partialorder %v655, %v657
    %v659 = vsel %vm658, %v654, inf
    %660 = vmin.xlane.f32.xlu0 %v659
    %v661 = vpop.xlane.xlu0 %660
    %v662 = vcvt.f32.s32 %v661
    %v663 = vcvt.f32.s32 %v657
    %v664 = vshll.u32 %v663, 16
    %v665 = vadd.s32 %v664, %v662
    %v666 = vsel %vm194, %v616, 2147483647
    %v667 = vand.u32 %v666, 65535
    %v668 = vshra.s32 %v666, 16
    %v669 = vcvt.s32.f32 %v667
    %v670 = vcvt.s32.f32 %v668
    %671 = vmin.xlane.f32.xlu0 %v670
    %v672 = vpop.xlane.xlu0 %671
    %vm673 = vcmp.eq.f32.partialorder %v670, %v672
    %v674 = vsel %vm673, %v669, inf
    %675 = vmin.xlane.f32.xlu0 %v674
    %v676 = vpop.xlane.xlu0 %675
    %v677 = vcvt.f32.s32 %v676
    %v678 = vcvt.f32.s32 %v672
    %v679 = vshll.u32 %v678, 16
    %v680 = vadd.s32 %v679, %v677
    %v681 = vsel %vm194, %v617, 2147483647
    %v682 = vand.u32 %v681, 65535
    %v683 = vshra.s32 %v681, 16
    %v684 = vcvt.s32.f32 %v682
    %v685 = vcvt.s32.f32 %v683
    %686 = vmin.xlane.f32.xlu0 %v685
    %v687 = vpop.xlane.xlu0 %686
    %vm688 = vcmp.eq.f32.partialorder %v685, %v687
    %v689 = vsel %vm688, %v684, inf
    %690 = vmin.xlane.f32.xlu0 %v689
    %v691 = vpop.xlane.xlu0 %690
    %v692 = vcvt.f32.s32 %v691
    %v693 = vcvt.f32.s32 %v687
    %v694 = vshll.u32 %v693, 16
    %v695 = vadd.s32 %v694, %v692
    %v696 = vsel %vm194, %v618, 2147483647
    %v697 = vand.u32 %v696, 65535
    %v698 = vshra.s32 %v696, 16
    %v699 = vcvt.s32.f32 %v697
    %v700 = vcvt.s32.f32 %v698
    %701 = vmin.xlane.f32.xlu0 %v700
    %v702 = vpop.xlane.xlu0 %701
    %vm703 = vcmp.eq.f32.partialorder %v700, %v702
    %v704 = vsel %vm703, %v699, inf
    %705 = vmin.xlane.f32.xlu0 %v704
    %v706 = vpop.xlane.xlu0 %705
    %v707 = vcvt.f32.s32 %v706
    %v708 = vcvt.f32.s32 %v702
    %v709 = vshll.u32 %v708, 16
    %v710 = vadd.s32 %v709, %v707
    %v711 = vsel %vm194, %v619, 2147483647
    %v712 = vand.u32 %v711, 65535
    %v713 = vshra.s32 %v711, 16
    %v714 = vcvt.s32.f32 %v712
    %v715 = vcvt.s32.f32 %v713
    %716 = vmin.xlane.f32.xlu0 %v715
    %v717 = vpop.xlane.xlu0 %716
    %vm718 = vcmp.eq.f32.partialorder %v715, %v717
    %v719 = vsel %vm718, %v714, inf
    %720 = vmin.xlane.f32.xlu0 %v719
    %v721 = vpop.xlane.xlu0 %720
    %v722 = vcvt.f32.s32 %v721
    %v723 = vcvt.f32.s32 %v717
    %v724 = vshll.u32 %v723, 16
    %v725 = vadd.s32 %v724, %v722
    %v726 = vsel %vm194, %v620, 2147483647
    %v727 = vand.u32 %v726, 65535
    %v728 = vshra.s32 %v726, 16
    %v729 = vcvt.s32.f32 %v727
    %v730 = vcvt.s32.f32 %v728
    %731 = vmin.xlane.f32.xlu0 %v730
    %v732 = vpop.xlane.xlu0 %731
    %vm733 = vcmp.eq.f32.partialorder %v730, %v732
    %v734 = vsel %vm733, %v729, inf
    %735 = vmin.xlane.f32.xlu0 %v734
    %v736 = vpop.xlane.xlu0 %735
    %v737 = vcvt.f32.s32 %v736
    %v738 = vcvt.f32.s32 %v732
    %v739 = vshll.u32 %v738, 16
    %v740 = vadd.s32 %v739, %v737
    %vm741 = vcmp.eq.s32.totalorder %v14, 2
    %v742 = vsel %vm741, %v583, %v549
    %v743 = vsel %vm741, %v586, %v550
    %v744 = vsel %vm741, %v589, %v551
    %v745 = vsel %vm741, %v592, %v552
    %v746 = vsel %vm741, %v595, %v553
    %v747 = vsel %vm741, %v598, %v554
    %v748 = vsel %vm741, %v601, %v555
    %v749 = vsel %vm741, %v604, %v556
    %v750 = vsel %vm741, %v635, %v557
    %v751 = vsel %vm741, %v650, %v558
    %v752 = vsel %vm741, %v665, %v559
    %v753 = vsel %vm741, %v680, %v560
    %v754 = vsel %vm741, %v695, %v561
    %v755 = vsel %vm741, %v710, %v562
    %v756 = vsel %vm741, %v725, %v563
    %v757 = vsel %vm741, %v740, %v564
    %vm758 = vcmp.eq.s32.totalorder %v14, %v635
    %vm759 = vcmp.eq.s32.totalorder %v14, %v650
    %vm760 = vcmp.eq.s32.totalorder %v14, %v665
    %vm761 = vcmp.eq.s32.totalorder %v14, %v680
    %vm762 = vcmp.eq.s32.totalorder %v14, %v695
    %vm763 = vcmp.eq.s32.totalorder %v14, %v710
    %vm764 = vcmp.eq.s32.totalorder %v14, %v725
    %vm765 = vcmp.eq.s32.totalorder %v14, %v740
    %v766 = vsel %vm758, -inf, %v573
    %v767 = vsel %vm759, -inf, %v574
    %v768 = vsel %vm760, -inf, %v575
    %v769 = vsel %vm761, -inf, %v576
    %v770 = vsel %vm762, -inf, %v577
    %v771 = vsel %vm763, -inf, %v578
    %v772 = vsel %vm764, -inf, %v579
    %v773 = vsel %vm765, -inf, %v580
    %v774 = vsel %vm194, %v766, -inf
    %775 = vmax.xlane.f32.xlu0 %v774
    %v776 = vpop.xlane.xlu0 %775
    %v777 = vsel %vm194, %v767, -inf
    %778 = vmax.xlane.f32.xlu0 %v777
    %v779 = vpop.xlane.xlu0 %778
    %v780 = vsel %vm194, %v768, -inf
    %781 = vmax.xlane.f32.xlu0 %v780
    %v782 = vpop.xlane.xlu0 %781
    %v783 = vsel %vm194, %v769, -inf
    %784 = vmax.xlane.f32.xlu0 %v783
    %v785 = vpop.xlane.xlu0 %784
    %v786 = vsel %vm194, %v770, -inf
    %787 = vmax.xlane.f32.xlu0 %v786
    %v788 = vpop.xlane.xlu0 %787
    %v789 = vsel %vm194, %v771, -inf
    %790 = vmax.xlane.f32.xlu0 %v789
    %v791 = vpop.xlane.xlu0 %790
    %v792 = vsel %vm194, %v772, -inf
    %793 = vmax.xlane.f32.xlu0 %v792
    %v794 = vpop.xlane.xlu0 %793
    %v795 = vsel %vm194, %v773, -inf
    %796 = vmax.xlane.f32.xlu0 %v795
    %v797 = vpop.xlane.xlu0 %796
    %vm798 = vcmp.eq.f32.partialorder %v766, %v776
    %vm799 = vcmp.eq.f32.partialorder %v767, %v779
    %vm800 = vcmp.eq.f32.partialorder %v768, %v782
    %vm801 = vcmp.eq.f32.partialorder %v769, %v785
    %vm802 = vcmp.eq.f32.partialorder %v770, %v788
    %vm803 = vcmp.eq.f32.partialorder %v771, %v791
    %vm804 = vcmp.eq.f32.partialorder %v772, %v794
    %vm805 = vcmp.eq.f32.partialorder %v773, %v797
    %v806 = vsel %vm798, %v14, 64
    %v807 = vsel %vm799, %v14, 64
    %v808 = vsel %vm800, %v14, 64
    %v809 = vsel %vm801, %v14, 64
    %v810 = vsel %vm802, %v14, 64
    %v811 = vsel %vm803, %v14, 64
    %v812 = vsel %vm804, %v14, 64
    %v813 = vsel %vm805, %v14, 64
    %v814 = vsel %vm194, %v806, 2147483647
    %v815 = vand.u32 %v814, 65535
    %v816 = vshra.s32 %v814, 16
    %v817 = vcvt.s32.f32 %v815
    %v818 = vcvt.s32.f32 %v816
    %819 = vmin.xlane.f32.xlu0 %v818
    %v820 = vpop.xlane.xlu0 %819
    %vm821 = vcmp.eq.f32.partialorder %v818, %v820
    %v822 = vsel %vm821, %v817, inf
    %823 = vmin.xlane.f32.xlu0 %v822
    %v824 = vpop.xlane.xlu0 %823
    %v825 = vcvt.f32.s32 %v824
    %v826 = vcvt.f32.s32 %v820
    %v827 = vshll.u32 %v826, 16
    %v828 = vadd.s32 %v827, %v825
    %v829 = vsel %vm194, %v807, 2147483647
    %v830 = vand.u32 %v829, 65535
    %v831 = vshra.s32 %v829, 16
    %v832 = vcvt.s32.f32 %v830
    %v833 = vcvt.s32.f32 %v831
    %834 = vmin.xlane.f32.xlu0 %v833
    %v835 = vpop.xlane.xlu0 %834
    %vm836 = vcmp.eq.f32.partialorder %v833, %v835
    %v837 = vsel %vm836, %v832, inf
    %838 = vmin.xlane.f32.xlu0 %v837
    %v839 = vpop.xlane.xlu0 %838
    %v840 = vcvt.f32.s32 %v839
    %v841 = vcvt.f32.s32 %v835
    %v842 = vshll.u32 %v841, 16
    %v843 = vadd.s32 %v842, %v840
    %v844 = vsel %vm194, %v808, 2147483647
    %v845 = vand.u32 %v844, 65535
    %v846 = vshra.s32 %v844, 16
    %v847 = vcvt.s32.f32 %v845
    %v848 = vcvt.s32.f32 %v846
    %849 = vmin.xlane.f32.xlu0 %v848
    %v850 = vpop.xlane.xlu0 %849
    %vm851 = vcmp.eq.f32.partialorder %v848, %v850
    %v852 = vsel %vm851, %v847, inf
    %853 = vmin.xlane.f32.xlu0 %v852
    %v854 = vpop.xlane.xlu0 %853
    %v855 = vcvt.f32.s32 %v854
    %v856 = vcvt.f32.s32 %v850
    %v857 = vshll.u32 %v856, 16
    %v858 = vadd.s32 %v857, %v855
    %v859 = vsel %vm194, %v809, 2147483647
    %v860 = vand.u32 %v859, 65535
    %v861 = vshra.s32 %v859, 16
    %v862 = vcvt.s32.f32 %v860
    %v863 = vcvt.s32.f32 %v861
    %864 = vmin.xlane.f32.xlu0 %v863
    %v865 = vpop.xlane.xlu0 %864
    %vm866 = vcmp.eq.f32.partialorder %v863, %v865
    %v867 = vsel %vm866, %v862, inf
    %868 = vmin.xlane.f32.xlu0 %v867
    %v869 = vpop.xlane.xlu0 %868
    %v870 = vcvt.f32.s32 %v869
    %v871 = vcvt.f32.s32 %v865
    %v872 = vshll.u32 %v871, 16
    %v873 = vadd.s32 %v872, %v870
    %v874 = vsel %vm194, %v810, 2147483647
    %v875 = vand.u32 %v874, 65535
    %v876 = vshra.s32 %v874, 16
    %v877 = vcvt.s32.f32 %v875
    %v878 = vcvt.s32.f32 %v876
    %879 = vmin.xlane.f32.xlu0 %v878
    %v880 = vpop.xlane.xlu0 %879
    %vm881 = vcmp.eq.f32.partialorder %v878, %v880
    %v882 = vsel %vm881, %v877, inf
    %883 = vmin.xlane.f32.xlu0 %v882
    %v884 = vpop.xlane.xlu0 %883
    %v885 = vcvt.f32.s32 %v884
    %v886 = vcvt.f32.s32 %v880
    %v887 = vshll.u32 %v886, 16
    %v888 = vadd.s32 %v887, %v885
    %v889 = vsel %vm194, %v811, 2147483647
    %v890 = vand.u32 %v889, 65535
    %v891 = vshra.s32 %v889, 16
    %v892 = vcvt.s32.f32 %v890
    %v893 = vcvt.s32.f32 %v891
    %894 = vmin.xlane.f32.xlu0 %v893
    %v895 = vpop.xlane.xlu0 %894
    %vm896 = vcmp.eq.f32.partialorder %v893, %v895
    %v897 = vsel %vm896, %v892, inf
    %898 = vmin.xlane.f32.xlu0 %v897
    %v899 = vpop.xlane.xlu0 %898
    %v900 = vcvt.f32.s32 %v899
    %v901 = vcvt.f32.s32 %v895
    %v902 = vshll.u32 %v901, 16
    %v903 = vadd.s32 %v902, %v900
    %v904 = vsel %vm194, %v812, 2147483647
    %v905 = vand.u32 %v904, 65535
    %v906 = vshra.s32 %v904, 16
    %v907 = vcvt.s32.f32 %v905
    %v908 = vcvt.s32.f32 %v906
    %909 = vmin.xlane.f32.xlu0 %v908
    %v910 = vpop.xlane.xlu0 %909
    %vm911 = vcmp.eq.f32.partialorder %v908, %v910
    %v912 = vsel %vm911, %v907, inf
    %913 = vmin.xlane.f32.xlu0 %v912
    %v914 = vpop.xlane.xlu0 %913
    %v915 = vcvt.f32.s32 %v914
    %v916 = vcvt.f32.s32 %v910
    %v917 = vshll.u32 %v916, 16
    %v918 = vadd.s32 %v917, %v915
    %v919 = vsel %vm194, %v813, 2147483647
    %v920 = vand.u32 %v919, 65535
    %v921 = vshra.s32 %v919, 16
    %v922 = vcvt.s32.f32 %v920
    %v923 = vcvt.s32.f32 %v921
    %924 = vmin.xlane.f32.xlu0 %v923
    %v925 = vpop.xlane.xlu0 %924
    %vm926 = vcmp.eq.f32.partialorder %v923, %v925
    %v927 = vsel %vm926, %v922, inf
    %928 = vmin.xlane.f32.xlu0 %v927
    %v929 = vpop.xlane.xlu0 %928
    %v930 = vcvt.f32.s32 %v929
    %v931 = vcvt.f32.s32 %v925
    %v932 = vshll.u32 %v931, 16
    %v933 = vadd.s32 %v932, %v930
    %vm934 = vcmp.eq.s32.totalorder %v14, 3
    %v935 = vsel %vm934, %v776, %v742
    %v936 = vsel %vm934, %v779, %v743
    %v937 = vsel %vm934, %v782, %v744
    %v938 = vsel %vm934, %v785, %v745
    %v939 = vsel %vm934, %v788, %v746
    %v940 = vsel %vm934, %v791, %v747
    %v941 = vsel %vm934, %v794, %v748
    %v942 = vsel %vm934, %v797, %v749
    %v943 = vsel %vm934, %v828, %v750
    %v944 = vsel %vm934, %v843, %v751
    %v945 = vsel %vm934, %v858, %v752
    %v946 = vsel %vm934, %v873, %v753
    %v947 = vsel %vm934, %v888, %v754
    %v948 = vsel %vm934, %v903, %v755
    %v949 = vsel %vm934, %v918, %v756
    %v950 = vsel %vm934, %v933, %v757
    %v951 = vmul.f32 %v935, 0.17677669
    %v952 = vmul.f32 %v936, 0.17677669
    %v953 = vmul.f32 %v937, 0.17677669
    %v954 = vmul.f32 %v938, 0.17677669
    %v955 = vmul.f32 %v939, 0.17677669
    %v956 = vmul.f32 %v940, 0.17677669
    %v957 = vmul.f32 %v941, 0.17677669
    %v958 = vmul.f32 %v942, 0.17677669
    %960 = vset.pattern.permute.xlu0 0
    %961 = vperm.xlu0 %960, %v951
    %v962 = vpop.permute.xlu0 %961
    %965 = vset.pattern.permute.xlu0 0
    %966 = vperm.xlu0 %965, %v952
    %v967 = vpop.permute.xlu0 %966
    %970 = vset.pattern.permute.xlu0 0
    %971 = vperm.xlu0 %970, %v953
    %v972 = vpop.permute.xlu0 %971
    %975 = vset.pattern.permute.xlu0 0
    %976 = vperm.xlu0 %975, %v954
    %v977 = vpop.permute.xlu0 %976
    %980 = vset.pattern.permute.xlu0 0
    %981 = vperm.xlu0 %980, %v955
    %v982 = vpop.permute.xlu0 %981
    %985 = vset.pattern.permute.xlu0 0
    %986 = vperm.xlu0 %985, %v956
    %v987 = vpop.permute.xlu0 %986
    %990 = vset.pattern.permute.xlu0 0
    %991 = vperm.xlu0 %990, %v957
    %v992 = vpop.permute.xlu0 %991
    %995 = vset.pattern.permute.xlu0 0
    %996 = vperm.xlu0 %995, %v958
    %v997 = vpop.permute.xlu0 %996
    %v999 = vsub.f32 %v951, %v962
    %v1000 = vsub.f32 %v952, %v967
    %v1001 = vsub.f32 %v953, %v972
    %v1002 = vsub.f32 %v954, %v977
    %v1003 = vsub.f32 %v955, %v982
    %v1004 = vsub.f32 %v956, %v987
    %v1005 = vsub.f32 %v957, %v992
    %v1006 = vsub.f32 %v958, %v997
    %v1007 = vmul.f32 %v999, 1.442695
    %v1008 = vpow.pop %v1007
    %v1009 = vmul.f32 %v1000, 1.442695
    %v1010 = vpow.pop %v1009
    %v1011 = vmul.f32 %v1001, 1.442695
    %v1012 = vpow.pop %v1011
    %v1013 = vmul.f32 %v1002, 1.442695
    %v1014 = vpow.pop %v1013
    %v1015 = vmul.f32 %v1003, 1.442695
    %v1016 = vpow.pop %v1015
    %v1017 = vmul.f32 %v1004, 1.442695
    %v1018 = vpow.pop %v1017
    %v1019 = vmul.f32 %v1005, 1.442695
    %v1020 = vpow.pop %v1019
    %v1021 = vmul.f32 %v1006, 1.442695
    %v1022 = vpow.pop %v1021
    %vm1023 = vcmask 31744
    %v1024 = vsel %vm1023, %v1008, 0.0
    %1025 = vadd.xlane.f32.xlu0 %v1024
    %v1026 = vpop.xlane.xlu0 %1025
    %v1027 = vsel %vm1023, %v1010, 0.0
    %1028 = vadd.xlane.f32.xlu0 %v1027
    %v1029 = vpop.xlane.xlu0 %1028
    %v1030 = vsel %vm1023, %v1012, 0.0
    %1031 = vadd.xlane.f32.xlu0 %v1030
    %v1032 = vpop.xlane.xlu0 %1031
    %v1033 = vsel %vm1023, %v1014, 0.0
    %1034 = vadd.xlane.f32.xlu0 %v1033
    %v1035 = vpop.xlane.xlu0 %1034
    %v1036 = vsel %vm1023, %v1016, 0.0
    %1037 = vadd.xlane.f32.xlu0 %v1036
    %v1038 = vpop.xlane.xlu0 %1037
    %v1039 = vsel %vm1023, %v1018, 0.0
    %1040 = vadd.xlane.f32.xlu0 %v1039
    %v1041 = vpop.xlane.xlu0 %1040
    %v1042 = vsel %vm1023, %v1020, 0.0
    %1043 = vadd.xlane.f32.xlu0 %v1042
    %v1044 = vpop.xlane.xlu0 %1043
    %v1045 = vsel %vm1023, %v1022, 0.0
    %1046 = vadd.xlane.f32.xlu0 %v1045
    %v1047 = vpop.xlane.xlu0 %1046
    %v1048 = vrcp.pop %v1026
    %v1049 = vmul.f32 %v1008, %v1048
    %v1050 = vrcp.pop %v1029
    %v1051 = vmul.f32 %v1010, %v1050
    %v1052 = vrcp.pop %v1032
    %v1053 = vmul.f32 %v1012, %v1052
    %v1054 = vrcp.pop %v1035
    %v1055 = vmul.f32 %v1014, %v1054
    %v1056 = vrcp.pop %v1038
    %v1057 = vmul.f32 %v1016, %v1056
    %v1058 = vrcp.pop %v1041
    %v1059 = vmul.f32 %v1018, %v1058
    %v1060 = vrcp.pop %v1044
    %v1061 = vmul.f32 %v1020, %v1060
    %v1062 = vrcp.pop %v1047
    %v1063 = vmul.f32 %v1022, %v1062
    %s1064 = scalar_lea.vmem %s2, %s21
    %1065 = vst.msk [vmem:[%s1064] sm:$0xff] %vm1023, %v1049
    %1066 = vst.msk [vmem:[%s1064 + $0x8] sm:$0xff] %vm1023, %v1051
    %1067 = vst.msk [vmem:[%s1064 + $0x10] sm:$0xff] %vm1023, %v1053
    %1068 = vst.msk [vmem:[%s1064 + $0x18] sm:$0xff] %vm1023, %v1055
    %1069 = vst.msk [vmem:[%s1064 + $0x20] sm:$0xff] %vm1023, %v1057
    %1070 = vst.msk [vmem:[%s1064 + $0x28] sm:$0xff] %vm1023, %v1059
    %1071 = vst.msk [vmem:[%s1064 + $0x30] sm:$0xff] %vm1023, %v1061
    %1072 = vst.msk [vmem:[%s1064 + $0x38] sm:$0xff] %vm1023, %v1063
    %s1073 = scalar_lea.vmem %s3, %s21
    %1074 = vst.msk [vmem:[%s1073] sm:$0xff] %vm1023, %v943
    %1075 = vst.msk [vmem:[%s1073 + $0x8] sm:$0xff] %vm1023, %v944
    %1076 = vst.msk [vmem:[%s1073 + $0x10] sm:$0xff] %vm1023, %v945
    %1077 = vst.msk [vmem:[%s1073 + $0x18] sm:$0xff] %vm1023, %v946
    %1078 = vst.msk [vmem:[%s1073 + $0x20] sm:$0xff] %vm1023, %v947
    %1079 = vst.msk [vmem:[%s1073 + $0x28] sm:$0xff] %vm1023, %v948
    %1080 = vst.msk [vmem:[%s1073 + $0x30] sm:$0xff] %vm1023, %v949
    %1081 = vst.msk [vmem:[%s1073 + $0x38] sm:$0xff] %vm1023, %v950
  $region14: #{tpu_custom_call.1} parent=0 // loop_footer
    %s20 = sadd.s32 1, %s16
  $region15: #{tpu_custom_call.1} parent=0 // loop_footer_branch
    %15 = sbr.rel target = $region11
  $region16: #{tpu_custom_call.1} parent=0 // loop_exit
    _
  // Predicated region
  $region17: #{tpu_custom_call.1} parent=0 // pred_check
    _
  $region18: #{tpu_custom_call.1} parent=0 // pred_check_branch
    %1083 = sbr.rel (0) target = $region20
  $region19: #{tpu_custom_call.1} parent=0 // pred_region
    _
  $region20: #{tpu_custom_call.1} parent=0 // pred_fallthru
    _
  // Predicated region
  $region21: #{tpu_custom_call.1} parent=0 // pred_check
    _
  $region22: #{tpu_custom_call.1} parent=0 // pred_check_branch
    %1085 = sbr.rel (0) target = $region24
  $region23: #{tpu_custom_call.1} parent=0 // pred_region
    _
  $region24: #{tpu_custom_call.1} parent=0 // pred_fallthru
    _
  // Predicated region
  $region25: #{tpu_custom_call.1} parent=0 // pred_check
    _
  $region26: #{tpu_custom_call.1} parent=0 // pred_check_branch
    %1087 = sbr.rel (0) target = $region28
  $region27: #{tpu_custom_call.1} parent=0 // pred_region
    _
  $region28: #{tpu_custom_call.1} parent=0 // pred_fallthru
    _
  // Predicated region
  $region29: #{tpu_custom_call.1} parent=0 // pred_check
    _
  $region30: #{tpu_custom_call.1} parent=0 // pred_check_branch
    %1089 = sbr.rel (0) target = $region32
  $region31: #{tpu_custom_call.1} parent=0 // pred_region
    _
  $region32: #{tpu_custom_call.1} parent=0 // pred_fallthru
    _

</llo_original>
